<compile_context>
chip_gen: v6e
topology: v6e:2x2x1
jax: 0.10.0
libtpu: 0.0.40
codegen_flags: <defaults>
</compile_context>

<pallas_src>
import functools

import numpy as np
import jax
import jax.numpy as jnp
from jax.experimental import pallas as pl
from jax.experimental.pallas import tpu as pltpu


def _round_up(x, m):
    return ((x + m - 1) // m) * m


def _cdiv(a, b):
    return -(-a // b)


def _vmem_capacity_bytes():
    """Physical VMEM per TensorCore; conservative fallback = v7x (64 MiB)."""
    try:
        info = pltpu.get_tpu_info()
        for attr in ("vmem_capacity_bytes", "vmem_bytes", "vmem_size_bytes"):
            v = getattr(info, attr, None)
            if v:
                return int(v)
    except Exception:
        pass
    return 64 * 1024 * 1024


# ----------------------------------------------------------------------------
# Fused TT-chain kernel (one batch tile per grid step)
# ----------------------------------------------------------------------------
def _ttlin_kernel(x_ref, *refs, inp_modes, out_modes, rpad, l_dims, tile_b):
    """Fused TT chain for one batch tile.  Batch is always on lanes.

    Layouts:
      S_0  = x_ref          : rows (m_0)            cols (m_1..m_{d-1}, B)
      S_i  (scratch, i>=1)  : rows (m_i, rp_i)      cols (m_{i+1}.., n_0..n_{i-1}, B)
      Y_i  (scratch, i<d-1) : rows (n_i, rp_{i+1})  cols = S_i cols
      out  = o_ref          : rows (n_{d-1})        cols (n_0..n_{d-2}, B)
    """
    d = len(inp_modes)
    core_refs = refs[:d]
    o_ref = refs[d]
    scratch = refs[d + 1:]
    y_refs = scratch[0::2]          # Y_i matmul staging, i = 0..d-2
    s_refs = scratch[1::2]          # S_{i+1} state,       i = 0..d-2

    cur = x_ref
    for i in range(d):
        g = core_refs[i][...]       # (n_i*rp_{i+1}, m_i*rp_i), pre-permuted/padded
        y = jnp.dot(g, cur[...], preferred_element_type=jnp.float32)

        if i == d - 1:
            # r_d == 1: rows are exactly n_{d-1}; direct lane-dense full-block store.
            o_ref[...] = y.astype(o_ref.dtype)
            break

        # One full-block store of the matmul result, then aligned regroup copies.
        y_refs[i][...] = y.astype(y_refs[i].dtype)

        n_i = out_modes[i]
        rp1 = rpad[i + 1]
        m_nxt = inp_modes[i + 1]
        rest = l_dims[i] // m_nxt
        # Regroup Y_i (rows (n_i, rp1), cols (m_{i+1}, rest, B)) into
        # S_{i+1}   (rows (m_{i+1}, rp1), cols (rest, n_i, B)).
        # Every copy is an (rp1 x TILE_B) block: rp1 is a multiple of the sublane
        # packing and TILE_B a multiple of 128 -> unmasked vld/vst only.
        # TODO(synk): for very large L_i (e.g. 8x8x8x8 modes) switch these static
        # loops to lax.fori_loop with pl.ds offsets to bound trace size.
        for m in range(m_nxt):
            for n in range(n_i):
                for j in range(rest):
                    s_refs[i][m * rp1:(m + 1) * rp1,
                              (j * n_i + n) * tile_b:(j * n_i + n + 1) * tile_b] = (
                        y_refs[i][n * rp1:(n + 1) * rp1,
                                  (m * rest + j) * tile_b:(m * rest + j + 1) * tile_b])
        cur = s_refs[i]


# ----------------------------------------------------------------------------
# Host-side core preparation: column permutation (r_i, m_i) -> (m_i, r_i) and
# zero padding of interior ranks to the sublane packing.  Tiny.
# ----------------------------------------------------------------------------
def _prepare_cores(cores, inp_modes, out_modes, ranks, rpad, dtype):
    d = len(inp_modes)
    prepped = []
    for i in range(d):
        n_i, m_i = out_modes[i], inp_modes[i]
        r_in, r_out = ranks[i], ranks[i + 1]
        rp_in, rp_out = rpad[i], rpad[i + 1]
        c = jnp.asarray(cores[i], jnp.float32).reshape(n_i, r_out, r_in, m_i)
        c = jnp.transpose(c, (0, 1, 3, 2))          # (n_i, r_out, m_i, r_in)
        c = jnp.pad(c, ((0, 0), (0, rp_out - r_out), (0, 0), (0, rp_in - r_in)))
        prepped.append(c.reshape(n_i * rp_out, m_i * rp_in).astype(dtype))
    return prepped


# ----------------------------------------------------------------------------
# Wrapper: one pallas_call for the whole TT chain
# ----------------------------------------------------------------------------
def ttlin_forward(x, cores, inp_modes, out_modes, mat_ranks, *,
                  batch_tile=None, max_batch_tile=1024,
                  compute_dtype=jnp.float32):
    inp_modes = tuple(int(v) for v in np.asarray(inp_modes).ravel())
    out_modes = tuple(int(v) for v in np.asarray(out_modes).ravel())
    ranks = tuple(int(v) for v in np.asarray(mat_ranks).ravel())
    d = len(inp_modes)
    assert len(out_modes) == d and len(ranks) == d + 1
    assert ranks[0] == 1 and ranks[-1] == 1, "TT boundary ranks must be 1"

    p_in = int(np.prod(inp_modes, dtype=np.int64))
    p_out = int(np.prod(out_modes, dtype=np.int64))
    m0, n_last = inp_modes[0], out_modes[-1]

    compute_dtype = jnp.dtype(compute_dtype)
    itemsize = compute_dtype.itemsize
    sub = 32 // itemsize                        # sublane packing: 8 (f32) / 16 (bf16)

    # Interior ranks padded to the sublane packing (unmasked regroup copies).
    rpad = [ranks[0]] + [_round_up(r, sub) for r in ranks[1:d]] + [ranks[d]]
    # L_i = number of free column groups at step i (batch excluded).
    l_dims = [int(np.prod(inp_modes[i + 1:], dtype=np.int64)
                  * np.prod(out_modes[:i], dtype=np.int64)) for i in range(d)]
    l_out = l_dims[d - 1]                       # == prod(out_modes[:-1])
    core_shapes = [(out_modes[i] * rpad[i + 1], inp_modes[i] * rpad[i])
                   for i in range(d)]

    x2 = jnp.reshape(x, (-1, p_in))
    batch = int(x2.shape[0])

    # ---- generation-aware VMEM budgeting / batch tile selection -------------
    def tile_bytes(tb):
        b = 2 * m0 * l_dims[0] * tb * itemsize          # input block (x2 buffers)
        b += 2 * n_last * l_out * tb * 4                # output block f32 (x2 buffers)
        b += 2 * sum(r * c for r, c in core_shapes) * itemsize
        for i in range(d - 1):                          # Y_i staging + S_{i+1} state
            b += out_modes[i] * rpad[i + 1] * l_dims[i] * tb * itemsize
            b += inp_modes[i + 1] * rpad[i + 1] * l_dims[i + 1] * tb * itemsize
        return b

    vmem_cap = _vmem_capacity_bytes()                   # 128 MiB v5e/v6e, 64 MiB v7x
    vmem_limit = int(min((vmem_cap * 3) // 4, 96 * 1024 * 1024))
    budget = int(vmem_limit * 0.8)                      # headroom for compiler temps

    if batch_tile is None:
        tb = 128
        while tb * 2 <= max_batch_tile and tile_bytes(tb * 2) <= budget:
            tb *= 2
    else:
        tb = max(128, _round_up(int(batch_tile), 128))
    tb = min(tb, _round_up(batch, 128))
    if batch > 128:     # keep >= 2 grid steps so both v7x TensorCores get work
        tb = min(tb, max(128, _round_up(_cdiv(batch, 2), 128)))
    nt = _cdiv(batch, tb)
    bp = nt * tb

    # ---- host-side data staging (one XLA transpose each way) ----------------
    kernel_cores = _prepare_cores(cores, inp_modes, out_modes, ranks, rpad,
                                  compute_dtype)

    x2 = x2.astype(compute_dtype)
    if bp != batch:
        x2 = jnp.pad(x2, ((0, bp - batch), (0, 0)))     # deterministic zero padding
    # (bp, p_in) -> (m_0, nt * L_0 * TILE_B): mode-0 on rows, batch on lanes.
    xk = x2.reshape(nt, tb, m0, l_dims[0])
    xk = jnp.transpose(xk, (2, 0, 3, 1)).reshape(m0, nt * l_dims[0] * tb)

    in_specs = [pl.BlockSpec((m0, l_dims[0] * tb), lambda i: (0, i))]
    for g in kernel_cores:
        in_specs.append(pl.BlockSpec(g.shape, lambda i: (0, 0)))
    out_spec = pl.BlockSpec((n_last, l_out * tb), lambda i: (0, i))
    out_shape = jax.ShapeDtypeStruct((n_last, nt * l_out * tb), jnp.float32)

    scratch = []
    for i in range(d - 1):
        scratch.append(pltpu.VMEM((out_modes[i] * rpad[i + 1],
                                   l_dims[i] * tb), compute_dtype))       # Y_i
        scratch.append(pltpu.VMEM((inp_modes[i + 1] * rpad[i + 1],
                                   l_dims[i + 1] * tb), compute_dtype))   # S_{i+1}

    flops = int(2 * bp * sum(r * c * l for (r, c), l in zip(core_shapes, l_dims)))
    bytes_accessed = int(m0 * l_dims[0] * bp * itemsize
                         + n_last * l_out * bp * 4
                         + sum(r * c for r, c in core_shapes) * itemsize)

    kernel = functools.partial(_ttlin_kernel,
                               inp_modes=inp_modes, out_modes=out_modes,
                               rpad=tuple(rpad), l_dims=tuple(l_dims), tile_b=tb)

    out_k = pl.pallas_call(
        kernel,
        out_shape=out_shape,
        grid_spec=pltpu.PrefetchScalarGridSpec(
            num_scalar_prefetch=0,
            grid=(nt,),
            in_specs=in_specs,
            out_specs=out_spec,
            scratch_shapes=scratch),
        compiler_params=pltpu.CompilerParams(
            dimension_semantics=("parallel",),
            vmem_limit_bytes=vmem_limit),
        cost_estimate=pl.CostEstimate(flops=flops, transcendentals=0,
                                      bytes_accessed=bytes_accessed),
    )(xk, *kernel_cores)

    # (n_{d-1}, nt*L_out*TILE_B) -> (batch, p_out); one XLA transpose back.
    out = out_k.reshape(n_last, nt, l_out, tb)
    out = jnp.transpose(out, (1, 3, 2, 0)).reshape(bp, p_out)
    return out[:batch]


# ----------------------------------------------------------------------------
# Deterministic parameter construction + pure-JAX reference
# ----------------------------------------------------------------------------
def make_tt_cores(key, inp_modes, out_modes, mat_ranks, dtype=jnp.float32):
    d = len(inp_modes)
    cores = []
    for i in range(d):
        rows = int(out_modes[i] * mat_ranks[i + 1])
        cols = int(mat_ranks[i] * inp_modes[i])
        key, sub = jax.random.split(key)
        bound = float(np.sqrt(6.0 / (rows + cols)))     # xavier_uniform
        cores.append(jax.random.uniform(sub, (rows, cols), dtype=dtype,
                                        minval=-bound, maxval=bound))
    return key, cores


def ttlin_reference(x, cores, inp_modes, out_modes, mat_ranks):
    """Literal JAX transcription of the PyTorch forward (no Pallas)."""
    d = len(inp_modes)
    p_in = int(np.prod(inp_modes))
    p_out = int(np.prod(out_modes))
    out = jnp.reshape(x, (-1, p_in))
    out = jnp.transpose(out, (1, 0))
    for i in range(d):
        out = jnp.reshape(out, (int(mat_ranks[i] * inp_modes[i]), -1))
        out = jnp.dot(cores[i], out)
        out = jnp.reshape(out, (int(out_modes[i]), -1))
        out = jnp.transpose(out, (1, 0))
    return jnp.reshape(out, (-1, p_out))


if __name__ == "__main__":
    key = jax.random.PRNGKey(0)

    def run_case(key, inp_modes, out_modes, mat_ranks, batch,
                 rtol=1e-4, atol=1e-5, **kw):
        p_in = int(np.prod(inp_modes))
        key, kx = jax.random.split(key)
        x = jax.random.normal(kx, (batch, p_in), dtype=jnp.float32)
        key, cores = make_tt_cores(key, inp_modes, out_modes, mat_ranks)
        out = jax.block_until_ready(
            ttlin_forward(x, cores, inp_modes, out_modes, mat_ranks, **kw))
        ref = jax.block_until_ready(
            ttlin_reference(x, cores, inp_modes, out_modes, mat_ranks))
        assert out.shape == (batch, int(np.prod(out_modes))), out.shape
        np.testing.assert_allclose(np.asarray(out), np.asarray(ref),
                                   rtol=rtol, atol=atol)
        return key

    # d=2 TT layer (modes 4x8 -> 4x8, ranks (1,3,1)), tiny batch: single tile
    # with zero-padded batch tail.
    key = run_case(key, (4, 8), (4, 8), (1, 3, 1), batch=2)
    # d=3 TT layer (modes 4x4x4 -> 4x4x4, ranks (1,2,2,1)): multi-tile batch
    # grid with a padded last tile.
    key = run_case(key, (4, 4, 4), (4, 4, 4), (1, 2, 2, 1), batch=384,
                   batch_tile=256)
    # bf16 operands / f32 accumulate (review item 5), multi-tile batch.
    key = run_case(key, (4, 8), (8, 4), (1, 4, 1), batch=256,
                   compute_dtype=jnp.bfloat16, rtol=5e-2, atol=5e-2)

    print("KERNEL_OK")
</pallas_src>

<mosaic_0001>
module attributes {stable_mosaic.version = 11 : i64} {
  func.func @_ttlin_kernel(%arg0: i32, %arg1: memref<4x1024xf32, #tpu.memory_space<vmem>>, %arg2: memref<32x4xf32, #tpu.memory_space<vmem>>, %arg3: memref<8x64xf32, #tpu.memory_space<vmem>>, %arg4: memref<8x512xf32, #tpu.memory_space<vmem>>, %arg5: memref<32x1024xf32, #tpu.memory_space<vmem>>, %arg6: memref<64x512xf32, #tpu.memory_space<vmem>>) attributes {dimension_semantics = [#tpu.dimension_semantics<parallel>], iteration_bounds = array<i64: 1>, scalar_prefetch = 0 : i64, scratch_operands = 2 : i64, tpu.core_type = #tpu.core_type<tc>, window_params = [{transform_indices = @transform_0, window_bounds = array<i64: 4, 1024>}, {pipeline_mode = #tpu.pipeline_mode<synchronous>, transform_indices = @transform_1, window_bounds = array<i64: 32, 4>}, {pipeline_mode = #tpu.pipeline_mode<synchronous>, transform_indices = @transform_2, window_bounds = array<i64: 8, 64>}, {transform_indices = @transform_3, window_bounds = array<i64: 8, 512>}]} {
    %c0 = arith.constant 0 : index
    %c0_0 = arith.constant 0 : index
    %0 = vector.load %arg2[%c0, %c0_0] : memref<32x4xf32, #tpu.memory_space<vmem>>, vector<32x4xf32>
    %c0_1 = arith.constant 0 : index
    %c0_2 = arith.constant 0 : index
    %1 = vector.load %arg1[%c0_1, %c0_2] : memref<4x1024xf32, #tpu.memory_space<vmem>>, vector<4x1024xf32>
    %cst = arith.constant dense<0.000000e+00> : vector<32x1024xf32>
    %2 = tpu.matmul %0, %1, %cst {dimension_numbers = #tpu.dot_dimension_numbers<[1], [0], [0], [1], [0, 0, 1, 1], [], []>} : vector<32x4xf32>, vector<4x1024xf32>, vector<32x1024xf32> -> vector<32x1024xf32>
    %c0_3 = arith.constant 0 : index
    %c0_4 = arith.constant 0 : index
    %3 = vector.load %arg5[%c0_3, %c0_4] : memref<32x1024xf32, #tpu.memory_space<vmem>>, vector<32x1024xf32>
    tpu.vector_store %arg5[%c0_3, %c0_4], %2 {strides = array<i32>} : memref<32x1024xf32, #tpu.memory_space<vmem>>, vector<32x1024xf32>,
    %c0_5 = arith.constant 0 : index
    %c0_6 = arith.constant 0 : index
    %4 = vector.load %arg5[%c0_5, %c0_6] : memref<32x1024xf32, #tpu.memory_space<vmem>>, vector<8x128xf32>
    %c0_7 = arith.constant 0 : index
    %c0_8 = arith.constant 0 : index
    %5 = vector.load %arg6[%c0_7, %c0_8] : memref<64x512xf32, #tpu.memory_space<vmem>>, vector<8x128xf32>
    tpu.vector_store %arg6[%c0_7, %c0_8], %4 {strides = array<i32>} : memref<64x512xf32, #tpu.memory_space<vmem>>, vector<8x128xf32>,
    %c8 = arith.constant 8 : index
    %c0_9 = arith.constant 0 : index
    %6 = vector.load %arg5[%c8, %c0_9] : memref<32x1024xf32, #tpu.memory_space<vmem>>, vector<8x128xf32>
    %c0_10 = arith.constant 0 : index
    %c128 = arith.constant 128 : index
    %7 = vector.load %arg6[%c0_10, %c128] : memref<64x512xf32, #tpu.memory_space<vmem>>, vector<8x128xf32>
    tpu.vector_store %arg6[%c0_10, %c128], %6 {strides = array<i32>} : memref<64x512xf32, #tpu.memory_space<vmem>>, vector<8x128xf32>,
    %c16 = arith.constant 16 : index
    %c0_11 = arith.constant 0 : index
    %8 = vector.load %arg5[%c16, %c0_11] : memref<32x1024xf32, #tpu.memory_space<vmem>>, vector<8x128xf32>
    %c0_12 = arith.constant 0 : index
    %c256 = arith.constant 256 : index
    %9 = vector.load %arg6[%c0_12, %c256] : memref<64x512xf32, #tpu.memory_space<vmem>>, vector<8x128xf32>
    tpu.vector_store %arg6[%c0_12, %c256], %8 {strides = array<i32>} : memref<64x512xf32, #tpu.memory_space<vmem>>, vector<8x128xf32>,
    %c24 = arith.constant 24 : index
    %c0_13 = arith.constant 0 : index
    %10 = vector.load %arg5[%c24, %c0_13] : memref<32x1024xf32, #tpu.memory_space<vmem>>, vector<8x128xf32>
    %c0_14 = arith.constant 0 : index
    %c384 = arith.constant 384 : index
    %11 = vector.load %arg6[%c0_14, %c384] : memref<64x512xf32, #tpu.memory_space<vmem>>, vector<8x128xf32>
    tpu.vector_store %arg6[%c0_14, %c384], %10 {strides = array<i32>} : memref<64x512xf32, #tpu.memory_space<vmem>>, vector<8x128xf32>,
    %c0_15 = arith.constant 0 : index
    %c128_16 = arith.constant 128 : index
    %12 = vector.load %arg5[%c0_15, %c128_16] : memref<32x1024xf32, #tpu.memory_space<vmem>>, vector<8x128xf32>
    %c8_17 = arith.constant 8 : index
    %c0_18 = arith.constant 0 : index
    %13 = vector.load %arg6[%c8_17, %c0_18] : memref<64x512xf32, #tpu.memory_space<vmem>>, vector<8x128xf32>
    tpu.vector_store %arg6[%c8_17, %c0_18], %12 {strides = array<i32>} : memref<64x512xf32, #tpu.memory_space<vmem>>, vector<8x128xf32>,
    %c8_19 = arith.constant 8 : index
    %c128_20 = arith.constant 128 : index
    %14 = vector.load %arg5[%c8_19, %c128_20] : memref<32x1024xf32, #tpu.memory_space<vmem>>, vector<8x128xf32>
    %c8_21 = arith.constant 8 : index
    %c128_22 = arith.constant 128 : index
    %15 = vector.load %arg6[%c8_21, %c128_22] : memref<64x512xf32, #tpu.memory_space<vmem>>, vector<8x128xf32>
    tpu.vector_store %arg6[%c8_21, %c128_22], %14 {strides = array<i32>} : memref<64x512xf32, #tpu.memory_space<vmem>>, vector<8x128xf32>,
    %c16_23 = arith.constant 16 : index
    %c128_24 = arith.constant 128 : index
    %16 = vector.load %arg5[%c16_23, %c128_24] : memref<32x1024xf32, #tpu.memory_space<vmem>>, vector<8x128xf32>
    %c8_25 = arith.constant 8 : index
    %c256_26 = arith.constant 256 : index
    %17 = vector.load %arg6[%c8_25, %c256_26] : memref<64x512xf32, #tpu.memory_space<vmem>>, vector<8x128xf32>
    tpu.vector_store %arg6[%c8_25, %c256_26], %16 {strides = array<i32>} : memref<64x512xf32, #tpu.memory_space<vmem>>, vector<8x128xf32>,
    %c24_27 = arith.constant 24 : index
    %c128_28 = arith.constant 128 : index
    %18 = vector.load %arg5[%c24_27, %c128_28] : memref<32x1024xf32, #tpu.memory_space<vmem>>, vector<8x128xf32>
    %c8_29 = arith.constant 8 : index
    %c384_30 = arith.constant 384 : index
    %19 = vector.load %arg6[%c8_29, %c384_30] : memref<64x512xf32, #tpu.memory_space<vmem>>, vector<8x128xf32>
    tpu.vector_store %arg6[%c8_29, %c384_30], %18 {strides = array<i32>} : memref<64x512xf32, #tpu.memory_space<vmem>>, vector<8x128xf32>,
    %c0_31 = arith.constant 0 : index
    %c256_32 = arith.constant 256 : index
    %20 = vector.load %arg5[%c0_31, %c256_32] : memref<32x1024xf32, #tpu.memory_space<vmem>>, vector<8x128xf32>
    %c16_33 = arith.constant 16 : index
    %c0_34 = arith.constant 0 : index
    %21 = vector.load %arg6[%c16_33, %c0_34] : memref<64x512xf32, #tpu.memory_space<vmem>>, vector<8x128xf32>
    tpu.vector_store %arg6[%c16_33, %c0_34], %20 {strides = array<i32>} : memref<64x512xf32, #tpu.memory_space<vmem>>, vector<8x128xf32>,
    %c8_35 = arith.constant 8 : index
    %c256_36 = arith.constant 256 : index
    %22 = vector.load %arg5[%c8_35, %c256_36] : memref<32x1024xf32, #tpu.memory_space<vmem>>, vector<8x128xf32>
    %c16_37 = arith.constant 16 : index
    %c128_38 = arith.constant 128 : index
    %23 = vector.load %arg6[%c16_37, %c128_38] : memref<64x512xf32, #tpu.memory_space<vmem>>, vector<8x128xf32>
    tpu.vector_store %arg6[%c16_37, %c128_38], %22 {strides = array<i32>} : memref<64x512xf32, #tpu.memory_space<vmem>>, vector<8x128xf32>,
    %c16_39 = arith.constant 16 : index
    %c256_40 = arith.constant 256 : index
    %24 = vector.load %arg5[%c16_39, %c256_40] : memref<32x1024xf32, #tpu.memory_space<vmem>>, vector<8x128xf32>
    %c16_41 = arith.constant 16 : index
    %c256_42 = arith.constant 256 : index
    %25 = vector.load %arg6[%c16_41, %c256_42] : memref<64x512xf32, #tpu.memory_space<vmem>>, vector<8x128xf32>
    tpu.vector_store %arg6[%c16_41, %c256_42], %24 {strides = array<i32>} : memref<64x512xf32, #tpu.memory_space<vmem>>, vector<8x128xf32>,
    %c24_43 = arith.constant 24 : index
    %c256_44 = arith.constant 256 : index
    %26 = vector.load %arg5[%c24_43, %c256_44] : memref<32x1024xf32, #tpu.memory_space<vmem>>, vector<8x128xf32>
    %c16_45 = arith.constant 16 : index
    %c384_46 = arith.constant 384 : index
    %27 = vector.load %arg6[%c16_45, %c384_46] : memref<64x512xf32, #tpu.memory_space<vmem>>, vector<8x128xf32>
    tpu.vector_store %arg6[%c16_45, %c384_46], %26 {strides = array<i32>} : memref<64x512xf32, #tpu.memory_space<vmem>>, vector<8x128xf32>,
    %c0_47 = arith.constant 0 : index
    %c384_48 = arith.constant 384 : index
    %28 = vector.load %arg5[%c0_47, %c384_48] : memref<32x1024xf32, #tpu.memory_space<vmem>>, vector<8x128xf32>
    %c24_49 = arith.constant 24 : index
    %c0_50 = arith.constant 0 : index
    %29 = vector.load %arg6[%c24_49, %c0_50] : memref<64x512xf32, #tpu.memory_space<vmem>>, vector<8x128xf32>
    tpu.vector_store %arg6[%c24_49, %c0_50], %28 {strides = array<i32>} : memref<64x512xf32, #tpu.memory_space<vmem>>, vector<8x128xf32>,
    %c8_51 = arith.constant 8 : index
    %c384_52 = arith.constant 384 : index
    %30 = vector.load %arg5[%c8_51, %c384_52] : memref<32x1024xf32, #tpu.memory_space<vmem>>, vector<8x128xf32>
    %c24_53 = arith.constant 24 : index
    %c128_54 = arith.constant 128 : index
    %31 = vector.load %arg6[%c24_53, %c128_54] : memref<64x512xf32, #tpu.memory_space<vmem>>, vector<8x128xf32>
    tpu.vector_store %arg6[%c24_53, %c128_54], %30 {strides = array<i32>} : memref<64x512xf32, #tpu.memory_space<vmem>>, vector<8x128xf32>,
    %c16_55 = arith.constant 16 : index
    %c384_56 = arith.constant 384 : index
    %32 = vector.load %arg5[%c16_55, %c384_56] : memref<32x1024xf32, #tpu.memory_space<vmem>>, vector<8x128xf32>
    %c24_57 = arith.constant 24 : index
    %c256_58 = arith.constant 256 : index
    %33 = vector.load %arg6[%c24_57, %c256_58] : memref<64x512xf32, #tpu.memory_space<vmem>>, vector<8x128xf32>
    tpu.vector_store %arg6[%c24_57, %c256_58], %32 {strides = array<i32>} : memref<64x512xf32, #tpu.memory_space<vmem>>, vector<8x128xf32>,
    %c24_59 = arith.constant 24 : index
    %c384_60 = arith.constant 384 : index
    %34 = vector.load %arg5[%c24_59, %c384_60] : memref<32x1024xf32, #tpu.memory_space<vmem>>, vector<8x128xf32>
    %c24_61 = arith.constant 24 : index
    %c384_62 = arith.constant 384 : index
    %35 = vector.load %arg6[%c24_61, %c384_62] : memref<64x512xf32, #tpu.memory_space<vmem>>, vector<8x128xf32>
    tpu.vector_store %arg6[%c24_61, %c384_62], %34 {strides = array<i32>} : memref<64x512xf32, #tpu.memory_space<vmem>>, vector<8x128xf32>,
    %c0_63 = arith.constant 0 : index
    %c512 = arith.constant 512 : index
    %36 = vector.load %arg5[%c0_63, %c512] : memref<32x1024xf32, #tpu.memory_space<vmem>>, vector<8x128xf32>
    %c32 = arith.constant 32 : index
    %c0_64 = arith.constant 0 : index
    %37 = vector.load %arg6[%c32, %c0_64] : memref<64x512xf32, #tpu.memory_space<vmem>>, vector<8x128xf32>
    tpu.vector_store %arg6[%c32, %c0_64], %36 {strides = array<i32>} : memref<64x512xf32, #tpu.memory_space<vmem>>, vector<8x128xf32>,
    %c8_65 = arith.constant 8 : index
    %c512_66 = arith.constant 512 : index
    %38 = vector.load %arg5[%c8_65, %c512_66] : memref<32x1024xf32, #tpu.memory_space<vmem>>, vector<8x128xf32>
    %c32_67 = arith.constant 32 : index
    %c128_68 = arith.constant 128 : index
    %39 = vector.load %arg6[%c32_67, %c128_68] : memref<64x512xf32, #tpu.memory_space<vmem>>, vector<8x128xf32>
    tpu.vector_store %arg6[%c32_67, %c128_68], %38 {strides = array<i32>} : memref<64x512xf32, #tpu.memory_space<vmem>>, vector<8x128xf32>,
    %c16_69 = arith.constant 16 : index
    %c512_70 = arith.constant 512 : index
    %40 = vector.load %arg5[%c16_69, %c512_70] : memref<32x1024xf32, #tpu.memory_space<vmem>>, vector<8x128xf32>
    %c32_71 = arith.constant 32 : index
    %c256_72 = arith.constant 256 : index
    %41 = vector.load %arg6[%c32_71, %c256_72] : memref<64x512xf32, #tpu.memory_space<vmem>>, vector<8x128xf32>
    tpu.vector_store %arg6[%c32_71, %c256_72], %40 {strides = array<i32>} : memref<64x512xf32, #tpu.memory_space<vmem>>, vector<8x128xf32>,
    %c24_73 = arith.constant 24 : index
    %c512_74 = arith.constant 512 : index
    %42 = vector.load %arg5[%c24_73, %c512_74] : memref<32x1024xf32, #tpu.memory_space<vmem>>, vector<8x128xf32>
    %c32_75 = arith.constant 32 : index
    %c384_76 = arith.constant 384 : index
    %43 = vector.load %arg6[%c32_75, %c384_76] : memref<64x512xf32, #tpu.memory_space<vmem>>, vector<8x128xf32>
    tpu.vector_store %arg6[%c32_75, %c384_76], %42 {strides = array<i32>} : memref<64x512xf32, #tpu.memory_space<vmem>>, vector<8x128xf32>,
    %c0_77 = arith.constant 0 : index
    %c640 = arith.constant 640 : index
    %44 = vector.load %arg5[%c0_77, %c640] : memref<32x1024xf32, #tpu.memory_space<vmem>>, vector<8x128xf32>
    %c40 = arith.constant 40 : index
    %c0_78 = arith.constant 0 : index
    %45 = vector.load %arg6[%c40, %c0_78] : memref<64x512xf32, #tpu.memory_space<vmem>>, vector<8x128xf32>
    tpu.vector_store %arg6[%c40, %c0_78], %44 {strides = array<i32>} : memref<64x512xf32, #tpu.memory_space<vmem>>, vector<8x128xf32>,
    %c8_79 = arith.constant 8 : index
    %c640_80 = arith.constant 640 : index
    %46 = vector.load %arg5[%c8_79, %c640_80] : memref<32x1024xf32, #tpu.memory_space<vmem>>, vector<8x128xf32>
    %c40_81 = arith.constant 40 : index
    %c128_82 = arith.constant 128 : index
    %47 = vector.load %arg6[%c40_81, %c128_82] : memref<64x512xf32, #tpu.memory_space<vmem>>, vector<8x128xf32>
    tpu.vector_store %arg6[%c40_81, %c128_82], %46 {strides = array<i32>} : memref<64x512xf32, #tpu.memory_space<vmem>>, vector<8x128xf32>,
    %c16_83 = arith.constant 16 : index
    %c640_84 = arith.constant 640 : index
    %48 = vector.load %arg5[%c16_83, %c640_84] : memref<32x1024xf32, #tpu.memory_space<vmem>>, vector<8x128xf32>
    %c40_85 = arith.constant 40 : index
    %c256_86 = arith.constant 256 : index
    %49 = vector.load %arg6[%c40_85, %c256_86] : memref<64x512xf32, #tpu.memory_space<vmem>>, vector<8x128xf32>
    tpu.vector_store %arg6[%c40_85, %c256_86], %48 {strides = array<i32>} : memref<64x512xf32, #tpu.memory_space<vmem>>, vector<8x128xf32>,
    %c24_87 = arith.constant 24 : index
    %c640_88 = arith.constant 640 : index
    %50 = vector.load %arg5[%c24_87, %c640_88] : memref<32x1024xf32, #tpu.memory_space<vmem>>, vector<8x128xf32>
    %c40_89 = arith.constant 40 : index
    %c384_90 = arith.constant 384 : index
    %51 = vector.load %arg6[%c40_89, %c384_90] : memref<64x512xf32, #tpu.memory_space<vmem>>, vector<8x128xf32>
    tpu.vector_store %arg6[%c40_89, %c384_90], %50 {strides = array<i32>} : memref<64x512xf32, #tpu.memory_space<vmem>>, vector<8x128xf32>,
    %c0_91 = arith.constant 0 : index
    %c768 = arith.constant 768 : index
    %52 = vector.load %arg5[%c0_91, %c768] : memref<32x1024xf32, #tpu.memory_space<vmem>>, vector<8x128xf32>
    %c48 = arith.constant 48 : index
    %c0_92 = arith.constant 0 : index
    %53 = vector.load %arg6[%c48, %c0_92] : memref<64x512xf32, #tpu.memory_space<vmem>>, vector<8x128xf32>
    tpu.vector_store %arg6[%c48, %c0_92], %52 {strides = array<i32>} : memref<64x512xf32, #tpu.memory_space<vmem>>, vector<8x128xf32>,
    %c8_93 = arith.constant 8 : index
    %c768_94 = arith.constant 768 : index
    %54 = vector.load %arg5[%c8_93, %c768_94] : memref<32x1024xf32, #tpu.memory_space<vmem>>, vector<8x128xf32>
    %c48_95 = arith.constant 48 : index
    %c128_96 = arith.constant 128 : index
    %55 = vector.load %arg6[%c48_95, %c128_96] : memref<64x512xf32, #tpu.memory_space<vmem>>, vector<8x128xf32>
    tpu.vector_store %arg6[%c48_95, %c128_96], %54 {strides = array<i32>} : memref<64x512xf32, #tpu.memory_space<vmem>>, vector<8x128xf32>,
    %c16_97 = arith.constant 16 : index
    %c768_98 = arith.constant 768 : index
    %56 = vector.load %arg5[%c16_97, %c768_98] : memref<32x1024xf32, #tpu.memory_space<vmem>>, vector<8x128xf32>
    %c48_99 = arith.constant 48 : index
    %c256_100 = arith.constant 256 : index
    %57 = vector.load %arg6[%c48_99, %c256_100] : memref<64x512xf32, #tpu.memory_space<vmem>>, vector<8x128xf32>
    tpu.vector_store %arg6[%c48_99, %c256_100], %56 {strides = array<i32>} : memref<64x512xf32, #tpu.memory_space<vmem>>, vector<8x128xf32>,
    %c24_101 = arith.constant 24 : index
    %c768_102 = arith.constant 768 : index
    %58 = vector.load %arg5[%c24_101, %c768_102] : memref<32x1024xf32, #tpu.memory_space<vmem>>, vector<8x128xf32>
    %c48_103 = arith.constant 48 : index
    %c384_104 = arith.constant 384 : index
    %59 = vector.load %arg6[%c48_103, %c384_104] : memref<64x512xf32, #tpu.memory_space<vmem>>, vector<8x128xf32>
    tpu.vector_store %arg6[%c48_103, %c384_104], %58 {strides = array<i32>} : memref<64x512xf32, #tpu.memory_space<vmem>>, vector<8x128xf32>,
    %c0_105 = arith.constant 0 : index
    %c896 = arith.constant 896 : index
    %60 = vector.load %arg5[%c0_105, %c896] : memref<32x1024xf32, #tpu.memory_space<vmem>>, vector<8x128xf32>
    %c56 = arith.constant 56 : index
    %c0_106 = arith.constant 0 : index
    %61 = vector.load %arg6[%c56, %c0_106] : memref<64x512xf32, #tpu.memory_space<vmem>>, vector<8x128xf32>
    tpu.vector_store %arg6[%c56, %c0_106], %60 {strides = array<i32>} : memref<64x512xf32, #tpu.memory_space<vmem>>, vector<8x128xf32>,
    %c8_107 = arith.constant 8 : index
    %c896_108 = arith.constant 896 : index
    %62 = vector.load %arg5[%c8_107, %c896_108] : memref<32x1024xf32, #tpu.memory_space<vmem>>, vector<8x128xf32>
    %c56_109 = arith.constant 56 : index
    %c128_110 = arith.constant 128 : index
    %63 = vector.load %arg6[%c56_109, %c128_110] : memref<64x512xf32, #tpu.memory_space<vmem>>, vector<8x128xf32>
    tpu.vector_store %arg6[%c56_109, %c128_110], %62 {strides = array<i32>} : memref<64x512xf32, #tpu.memory_space<vmem>>, vector<8x128xf32>,
    %c16_111 = arith.constant 16 : index
    %c896_112 = arith.constant 896 : index
    %64 = vector.load %arg5[%c16_111, %c896_112] : memref<32x1024xf32, #tpu.memory_space<vmem>>, vector<8x128xf32>
    %c56_113 = arith.constant 56 : index
    %c256_114 = arith.constant 256 : index
    %65 = vector.load %arg6[%c56_113, %c256_114] : memref<64x512xf32, #tpu.memory_space<vmem>>, vector<8x128xf32>
    tpu.vector_store %arg6[%c56_113, %c256_114], %64 {strides = array<i32>} : memref<64x512xf32, #tpu.memory_space<vmem>>, vector<8x128xf32>,
    %c24_115 = arith.constant 24 : index
    %c896_116 = arith.constant 896 : index
    %66 = vector.load %arg5[%c24_115, %c896_116] : memref<32x1024xf32, #tpu.memory_space<vmem>>, vector<8x128xf32>
    %c56_117 = arith.constant 56 : index
    %c384_118 = arith.constant 384 : index
    %67 = vector.load %arg6[%c56_117, %c384_118] : memref<64x512xf32, #tpu.memory_space<vmem>>, vector<8x128xf32>
    tpu.vector_store %arg6[%c56_117, %c384_118], %66 {strides = array<i32>} : memref<64x512xf32, #tpu.memory_space<vmem>>, vector<8x128xf32>,
    %c0_119 = arith.constant 0 : index
    %c0_120 = arith.constant 0 : index
    %68 = vector.load %arg3[%c0_119, %c0_120] : memref<8x64xf32, #tpu.memory_space<vmem>>, vector<8x64xf32>
    %c0_121 = arith.constant 0 : index
    %c0_122 = arith.constant 0 : index
    %69 = vector.load %arg6[%c0_121, %c0_122] : memref<64x512xf32, #tpu.memory_space<vmem>>, vector<64x512xf32>
    %cst_123 = arith.constant dense<0.000000e+00> : vector<8x512xf32>
    %70 = tpu.matmul %68, %69, %cst_123 {dimension_numbers = #tpu.dot_dimension_numbers<[1], [0], [0], [1], [0, 0, 1, 1], [], []>} : vector<8x64xf32>, vector<64x512xf32>, vector<8x512xf32> -> vector<8x512xf32>
    %c0_124 = arith.constant 0 : index
    %c0_125 = arith.constant 0 : index
    %71 = vector.load %arg4[%c0_124, %c0_125] : memref<8x512xf32, #tpu.memory_space<vmem>>, vector<8x512xf32>
    tpu.vector_store %arg4[%c0_124, %c0_125], %70 {strides = array<i32>} : memref<8x512xf32, #tpu.memory_space<vmem>>, vector<8x512xf32>,
    return
  }
  func.func @transform_0(%arg0: i32) -> (i32, i32) {
    %c0_i32 = arith.constant 0 : i32
    %c0_i32_0 = arith.constant 0 : i32
    return %c0_i32, %arg0 : i32, i32
  }
  func.func @transform_1(%arg0: i32) -> (i32, i32) {
    %c0_i32 = arith.constant 0 : i32
    %c0_i32_0 = arith.constant 0 : i32
    %c0_i32_1 = arith.constant 0 : i32
    return %c0_i32, %c0_i32_0 : i32, i32
  }
  func.func @transform_2(%arg0: i32) -> (i32, i32) {
    %c0_i32 = arith.constant 0 : i32
    %c0_i32_0 = arith.constant 0 : i32
    %c0_i32_1 = arith.constant 0 : i32
    return %c0_i32, %c0_i32_0 : i32, i32
  }
  func.func @transform_3(%arg0: i32) -> (i32, i32) {
    %c0_i32 = arith.constant 0 : i32
    %c0_i32_0 = arith.constant 0 : i32
    return %c0_i32, %arg0 : i32, i32
  }
}

</mosaic_0001>

<llo_original>
// kernel: tpu_custom_call.1
$region0: #{tpu_custom_call.1}
  #allocation0 [shape = 'u32[]', space=smem, size = 0x4, offset = 0x4, fixed_abs, tag = 'smem constant byte address 0x4 - core index']
  #allocation1 [shape = 'u32[144,128]{1,0:T(1,128)}', space=vmem, size = 0x12000, scoped, tag = 'internal scratch']
  #allocation2 [shape = 'f32[32,1024]{1,0:T(8,128)}', space=vmem, size = 0x20000, scoped, tag = 'scratch operand']
  #allocation3 [shape = 'f32[64,512]{1,0:T(8,128)}', space=vmem, size = 0x20000, scoped, tag = 'scratch operand']
  %s0 = inlined_call_operand.vmem [shape: f32[4,1024], index: 0, kind: input, shape index: {}]
  %s1 = inlined_call_operand.vmem [shape: f32[32,4], index: 1, kind: input, shape index: {}]
  %s2 = inlined_call_operand.hbm [shape: f32[8,64], index: 2, kind: input, shape index: {}]
  %s3 = inlined_call_operand.hbm [shape: f32[8,512], index: 3, kind: output, shape index: {}]
  %s4 = sld [smem:[#allocation0]]
  $region26: #{tpu_custom_call.1} parent=0
    _
  %s6 = ssub.s32 1, %s4
  %s7 = scalar_select 0, %s6, %s4
  $region1: #{tpu_custom_call.1} parent=0
    #allocation4 [shape = 'u8[4096]{0}', space=vmem, size = 0x1000, scoped, tag = 'input window, operand 2, single buffered']
    #allocation5 [shape = 's32[1]{0}', space=sflag, size = 0x4, scoped, tag = 'scoped memory for tpu_custom_call.1']
    #allocation6 [shape = 's32[1]{0}', space=sflag, size = 0x4, scoped, tag = 'scoped memory for tpu_custom_call.1']
    #allocation7 [shape = 'u8[16384]{0}', space=vmem, size = 0x4000, scoped, tag = 'output window, operand 0, single buffered']
    %8 = vsyncpa [#allocation5], 0
    %9 = vsyncpa [#allocation6], 0
    // Predicated region
    $region2: #{tpu_custom_call.1} parent=1 // pred_check
      _
    $region3: #{tpu_custom_call.1} parent=1 // pred_check_branch
      %11 = sbr.rel (0) target = $region5
    $region4: #{tpu_custom_call.1} parent=1 // pred_region
      _
    $region5: #{tpu_custom_call.1} parent=1 // pred_fallthru
      _
    // Predicated region
    $region6: #{tpu_custom_call.1} parent=1 // pred_check
      _
    $region7: #{tpu_custom_call.1} parent=1 // pred_check_branch
      %13 = sbr.rel (0) target = $region9
    $region8: #{tpu_custom_call.1} parent=1 // pred_region
      _
    $region9: #{tpu_custom_call.1} parent=1 // pred_fallthru
      _
    // Predicated region
    $region10: #{tpu_custom_call.1} parent=1 // pred_check
      _
    $region11: #{tpu_custom_call.1} parent=1 // pred_check_branch
      %15 = sbr.rel (0) target = $region13
    $region12: #{tpu_custom_call.1} parent=1 // pred_region
      %s17 = ssub.s32 128, 128
      %18 = vsyncadd [#allocation5], %s17
      %s20 = sshll.u32 [#allocation4], 4
      %s21 = int_to_ptr.vmem [resolvable:$true] %s20
      %23 = dma.hbm_to_vmem [thread:$0]  %s2, 128, %s21, [#allocation5]
    $region13: #{tpu_custom_call.1} parent=1 // pred_fallthru
      _
    // Predicated region
    $region14: #{tpu_custom_call.1} parent=1 // pred_check
      _
    $region15: #{tpu_custom_call.1} parent=1 // pred_check_branch
      %25 = sbr.rel (0) target = $region17
    $region16: #{tpu_custom_call.1} parent=1 // pred_region
      %26 = dma.done [#allocation5], 128
    $region17: #{tpu_custom_call.1} parent=1 // pred_fallthru
      _
    %v27 = vld [vmem:[%s1] sm:$0xff]
    %v28 = vld [vmem:[%s1 + $0x8] sm:$0xff]
    %v29 = vld [vmem:[%s1 + $0x10] sm:$0xff]
    %v30 = vld [vmem:[%s1 + $0x18] sm:$0xff]
    %v31 = vld [vmem:[%s0] sm:$0xff]
    %v32 = vld [vmem:[%s0 + $0x8] sm:$0xff]
    %v33 = vld [vmem:[%s0 + $0x10] sm:$0xff]
    %v34 = vld [vmem:[%s0 + $0x18] sm:$0xff]
    %v39 = vcombine.high %v31, %v31
    %v40 = vcombine.high %v32, %v32
    %v41 = vcombine.high %v33, %v33
    %v42 = vcombine.high %v34, %v34
    %vm43 = vcmask 31744
    %v45 = vsel %vm43, %v27, 0
    %v48 = vsel %vm43, %v28, 0
    %v51 = vsel %vm43, %v29, 0
    %v54 = vsel %vm43, %v30, 0
    %vm56 = vcmask 1043456
    %v57 = vsel %vm56, %v31, 0
    %v59 = vsel %vm56, %v39, 0
    %v61 = vsel %vm56, %v32, 0
    %v63 = vsel %vm56, %v40, 0
    %v65 = vsel %vm56, %v33, 0
    %v67 = vsel %vm56, %v41, 0
    %v69 = vsel %vm56, %v34, 0
    %v71 = vsel %vm56, %v42, 0
    %73 = vmatprep.subr.mxu0 0.0
    %74 = vmatpush1.msra.mxu0 0.0
    %75 = vmatprep.subr.mxu0 0.0
    %76 = vmatpush1.msra.mxu0 0.0
    %77 = vmatprep.subr.mxu0 0.0
    %78 = vmatpush1.msra.mxu0 0.0
    %79 = vmatprep.subr.mxu0 0.0
    %80 = vmatpush1.msra.mxu0 0.0
    %81 = vmatprep.subr.mxu0 0.0
    %82 = vmatpush1.msra.mxu0 0.0
    %83 = vmatprep.subr.mxu0 0.0
    %84 = vmatpush1.msra.mxu0 0.0
    %85 = vmatprep.subr.mxu0 0.0
    %86 = vmatpush1.msra.mxu0 0.0
    %87 = vmatprep.subr.mxu0 0.0
    %88 = vmatpush1.msra.mxu0 0.0
    %89 = vmatprep.subr.mxu0 0.0
    %90 = vmatpush1.msra.mxu0 0.0
    %91 = vmatprep.subr.mxu0 0.0
    %92 = vmatpush1.msra.mxu0 0.0
    %93 = vmatprep.subr.mxu0 0.0
    %94 = vmatpush1.msra.mxu0 0.0
    %95 = vmatprep.subr.mxu0 0.0
    %96 = vmatpush1.msra.mxu0 0.0
    %97 = vmatprep.subr.mxu0 0.0
    %98 = vmatpush1.msra.mxu0 0.0
    %99 = vmatprep.subr.mxu0 0.0
    %100 = vmatpush1.msra.mxu0 0.0
    %101 = vmatprep.subr.mxu0 0.0
    %102 = vmatpush1.msra.mxu0 0.0
    %103 = vmatprep.subr.mxu0 %v59
    %104 = vmatpush1.msra.mxu0 %v57
    %105 = vmatprep.subr.mxu0 0.0
    %106 = vmatpush2.msra.mxu0 0.0
    %107 = vmatprep.subr.mxu0 0.0
    %108 = vmatpush2.msra.mxu0 0.0
    %109 = vmatprep.subr.mxu0 0.0
    %110 = vmatpush2.msra.mxu0 0.0
    %111 = vmatprep.subr.mxu0 0.0
    %112 = vmatpush2.msra.mxu0 0.0
    %113 = vmatprep.subr.mxu0 0.0
    %114 = vmatpush2.msra.mxu0 0.0
    %115 = vmatprep.subr.mxu0 0.0
    %116 = vmatpush2.msra.mxu0 0.0
    %117 = vmatprep.subr.mxu0 0.0
    %118 = vmatpush2.msra.mxu0 0.0
    %119 = vmatprep.subr.mxu0 0.0
    %120 = vmatpush2.msra.mxu0 0.0
    %121 = vmatprep.subr.mxu0 0.0
    %122 = vmatpush2.msra.mxu0 0.0
    %123 = vmatprep.subr.mxu0 0.0
    %124 = vmatpush2.msra.mxu0 0.0
    %125 = vmatprep.subr.mxu0 0.0
    %126 = vmatpush2.msra.mxu0 0.0
    %127 = vmatprep.subr.mxu0 0.0
    %128 = vmatpush2.msra.mxu0 0.0
    %129 = vmatprep.subr.mxu0 0.0
    %130 = vmatpush2.msra.mxu0 0.0
    %131 = vmatprep.subr.mxu0 0.0
    %132 = vmatpush2.msra.mxu0 0.0
    %133 = vmatprep.subr.mxu0 0.0
    %134 = vmatpush2.msra.mxu0 0.0
    %135 = vmatprep.subr.mxu0 0.0
    %136 = vmatpush2.msra.mxu0 0.0
    %137 = vmatprep.mubr.f32.mxu0 0.0
    %138 = vmatmul.mubr.f32.gmra.mxu0 %v45
    %v139 = vpop.f32.mrf.mxu0
    %v140 = vadd.f32 0.0, %v139
    %v141 = vpop.f32.mrf.mxu0
    %v142 = vadd.f32 0.0, %v141
    %143 = vmatprep.mubr.f32.mxu0 0.0
    %144 = vmatmul.mubr.f32.gmra.mxu0 %v48
    %v145 = vpop.f32.mrf.mxu0
    %v146 = vadd.f32 0.0, %v145
    %v147 = vpop.f32.mrf.mxu0
    %v148 = vadd.f32 0.0, %v147
    %149 = vmatprep.mubr.f32.mxu0 0.0
    %150 = vmatmul.mubr.f32.gmra.mxu0 %v51
    %v151 = vpop.f32.mrf.mxu0
    %v152 = vadd.f32 0.0, %v151
    %v153 = vpop.f32.mrf.mxu0
    %v154 = vadd.f32 0.0, %v153
    %155 = vmatprep.mubr.f32.mxu0 0.0
    %156 = vmatmul.mubr.f32.gmra.mxu0 %v54
    %v157 = vpop.f32.mrf.mxu0
    %v158 = vadd.f32 0.0, %v157
    %v159 = vpop.f32.mrf.mxu0
    %v160 = vadd.f32 0.0, %v159
    %161 = vdwg.mxu0
    %162 = vmatprep.subr.mxu0 0.0
    %163 = vmatpush1.msra.mxu0 0.0
    %164 = vmatprep.subr.mxu0 0.0
    %165 = vmatpush1.msra.mxu0 0.0
    %166 = vmatprep.subr.mxu0 0.0
    %167 = vmatpush1.msra.mxu0 0.0
    %168 = vmatprep.subr.mxu0 0.0
    %169 = vmatpush1.msra.mxu0 0.0
    %170 = vmatprep.subr.mxu0 0.0
    %171 = vmatpush1.msra.mxu0 0.0
    %172 = vmatprep.subr.mxu0 0.0
    %173 = vmatpush1.msra.mxu0 0.0
    %174 = vmatprep.subr.mxu0 0.0
    %175 = vmatpush1.msra.mxu0 0.0
    %176 = vmatprep.subr.mxu0 0.0
    %177 = vmatpush1.msra.mxu0 0.0
    %178 = vmatprep.subr.mxu0 0.0
    %179 = vmatpush1.msra.mxu0 0.0
    %180 = vmatprep.subr.mxu0 0.0
    %181 = vmatpush1.msra.mxu0 0.0
    %182 = vmatprep.subr.mxu0 0.0
    %183 = vmatpush1.msra.mxu0 0.0
    %184 = vmatprep.subr.mxu0 0.0
    %185 = vmatpush1.msra.mxu0 0.0
    %186 = vmatprep.subr.mxu0 0.0
    %187 = vmatpush1.msra.mxu0 0.0
    %188 = vmatprep.subr.mxu0 0.0
    %189 = vmatpush1.msra.mxu0 0.0
    %190 = vmatprep.subr.mxu0 0.0
    %191 = vmatpush1.msra.mxu0 0.0
    %192 = vmatprep.subr.mxu0 %v63
    %193 = vmatpush1.msra.mxu0 %v61
    %194 = vmatprep.subr.mxu0 0.0
    %195 = vmatpush2.msra.mxu0 0.0
    %196 = vmatprep.subr.mxu0 0.0
    %197 = vmatpush2.msra.mxu0 0.0
    %198 = vmatprep.subr.mxu0 0.0
    %199 = vmatpush2.msra.mxu0 0.0
    %200 = vmatprep.subr.mxu0 0.0
    %201 = vmatpush2.msra.mxu0 0.0
    %202 = vmatprep.subr.mxu0 0.0
    %203 = vmatpush2.msra.mxu0 0.0
    %204 = vmatprep.subr.mxu0 0.0
    %205 = vmatpush2.msra.mxu0 0.0
    %206 = vmatprep.subr.mxu0 0.0
    %207 = vmatpush2.msra.mxu0 0.0
    %208 = vmatprep.subr.mxu0 0.0
    %209 = vmatpush2.msra.mxu0 0.0
    %210 = vmatprep.subr.mxu0 0.0
    %211 = vmatpush2.msra.mxu0 0.0
    %212 = vmatprep.subr.mxu0 0.0
    %213 = vmatpush2.msra.mxu0 0.0
    %214 = vmatprep.subr.mxu0 0.0
    %215 = vmatpush2.msra.mxu0 0.0
    %216 = vmatprep.subr.mxu0 0.0
    %217 = vmatpush2.msra.mxu0 0.0
    %218 = vmatprep.subr.mxu0 0.0
    %219 = vmatpush2.msra.mxu0 0.0
    %220 = vmatprep.subr.mxu0 0.0
    %221 = vmatpush2.msra.mxu0 0.0
    %222 = vmatprep.subr.mxu0 0.0
    %223 = vmatpush2.msra.mxu0 0.0
    %224 = vmatprep.subr.mxu0 0.0
    %225 = vmatpush2.msra.mxu0 0.0
    %226 = vmatprep.mubr.f32.mxu0 0.0
    %227 = vmatmul.mubr.f32.gmra.mxu0 %v45
    %v228 = vpop.f32.mrf.mxu0
    %v229 = vadd.f32 0.0, %v228
    %v230 = vpop.f32.mrf.mxu0
    %v231 = vadd.f32 0.0, %v230
    %232 = vmatprep.mubr.f32.mxu0 0.0
    %233 = vmatmul.mubr.f32.gmra.mxu0 %v48
    %v234 = vpop.f32.mrf.mxu0
    %v235 = vadd.f32 0.0, %v234
    %v236 = vpop.f32.mrf.mxu0
    %v237 = vadd.f32 0.0, %v236
    %238 = vmatprep.mubr.f32.mxu0 0.0
    %239 = vmatmul.mubr.f32.gmra.mxu0 %v51
    %v240 = vpop.f32.mrf.mxu0
    %v241 = vadd.f32 0.0, %v240
    %v242 = vpop.f32.mrf.mxu0
    %v243 = vadd.f32 0.0, %v242
    %244 = vmatprep.mubr.f32.mxu0 0.0
    %245 = vmatmul.mubr.f32.gmra.mxu0 %v54
    %v246 = vpop.f32.mrf.mxu0
    %v247 = vadd.f32 0.0, %v246
    %v248 = vpop.f32.mrf.mxu0
    %v249 = vadd.f32 0.0, %v248
    %250 = vdwg.mxu0
    %251 = vmatprep.subr.mxu0 0.0
    %252 = vmatpush1.msra.mxu0 0.0
    %253 = vmatprep.subr.mxu0 0.0
    %254 = vmatpush1.msra.mxu0 0.0
    %255 = vmatprep.subr.mxu0 0.0
    %256 = vmatpush1.msra.mxu0 0.0
    %257 = vmatprep.subr.mxu0 0.0
    %258 = vmatpush1.msra.mxu0 0.0
    %259 = vmatprep.subr.mxu0 0.0
    %260 = vmatpush1.msra.mxu0 0.0
    %261 = vmatprep.subr.mxu0 0.0
    %262 = vmatpush1.msra.mxu0 0.0
    %263 = vmatprep.subr.mxu0 0.0
    %264 = vmatpush1.msra.mxu0 0.0
    %265 = vmatprep.subr.mxu0 0.0
    %266 = vmatpush1.msra.mxu0 0.0
    %267 = vmatprep.subr.mxu0 0.0
    %268 = vmatpush1.msra.mxu0 0.0
    %269 = vmatprep.subr.mxu0 0.0
    %270 = vmatpush1.msra.mxu0 0.0
    %271 = vmatprep.subr.mxu0 0.0
    %272 = vmatpush1.msra.mxu0 0.0
    %273 = vmatprep.subr.mxu0 0.0
    %274 = vmatpush1.msra.mxu0 0.0
    %275 = vmatprep.subr.mxu0 0.0
    %276 = vmatpush1.msra.mxu0 0.0
    %277 = vmatprep.subr.mxu0 0.0
    %278 = vmatpush1.msra.mxu0 0.0
    %279 = vmatprep.subr.mxu0 0.0
    %280 = vmatpush1.msra.mxu0 0.0
    %281 = vmatprep.subr.mxu0 %v67
    %282 = vmatpush1.msra.mxu0 %v65
    %283 = vmatprep.subr.mxu0 0.0
    %284 = vmatpush2.msra.mxu0 0.0
    %285 = vmatprep.subr.mxu0 0.0
    %286 = vmatpush2.msra.mxu0 0.0
    %287 = vmatprep.subr.mxu0 0.0
    %288 = vmatpush2.msra.mxu0 0.0
    %289 = vmatprep.subr.mxu0 0.0
    %290 = vmatpush2.msra.mxu0 0.0
    %291 = vmatprep.subr.mxu0 0.0
    %292 = vmatpush2.msra.mxu0 0.0
    %293 = vmatprep.subr.mxu0 0.0
    %294 = vmatpush2.msra.mxu0 0.0
    %295 = vmatprep.subr.mxu0 0.0
    %296 = vmatpush2.msra.mxu0 0.0
    %297 = vmatprep.subr.mxu0 0.0
    %298 = vmatpush2.msra.mxu0 0.0
    %299 = vmatprep.subr.mxu0 0.0
    %300 = vmatpush2.msra.mxu0 0.0
    %301 = vmatprep.subr.mxu0 0.0
    %302 = vmatpush2.msra.mxu0 0.0
    %303 = vmatprep.subr.mxu0 0.0
    %304 = vmatpush2.msra.mxu0 0.0
    %305 = vmatprep.subr.mxu0 0.0
    %306 = vmatpush2.msra.mxu0 0.0
    %307 = vmatprep.subr.mxu0 0.0
    %308 = vmatpush2.msra.mxu0 0.0
    %309 = vmatprep.subr.mxu0 0.0
    %310 = vmatpush2.msra.mxu0 0.0
    %311 = vmatprep.subr.mxu0 0.0
    %312 = vmatpush2.msra.mxu0 0.0
    %313 = vmatprep.subr.mxu0 0.0
    %314 = vmatpush2.msra.mxu0 0.0
    %315 = vmatprep.mubr.f32.mxu0 0.0
    %316 = vmatmul.mubr.f32.gmra.mxu0 %v45
    %v317 = vpop.f32.mrf.mxu0
    %v318 = vadd.f32 0.0, %v317
    %v319 = vpop.f32.mrf.mxu0
    %v320 = vadd.f32 0.0, %v319
    %321 = vmatprep.mubr.f32.mxu0 0.0
    %322 = vmatmul.mubr.f32.gmra.mxu0 %v48
    %v323 = vpop.f32.mrf.mxu0
    %v324 = vadd.f32 0.0, %v323
    %v325 = vpop.f32.mrf.mxu0
    %v326 = vadd.f32 0.0, %v325
    %327 = vmatprep.mubr.f32.mxu0 0.0
    %328 = vmatmul.mubr.f32.gmra.mxu0 %v51
    %v329 = vpop.f32.mrf.mxu0
    %v330 = vadd.f32 0.0, %v329
    %v331 = vpop.f32.mrf.mxu0
    %v332 = vadd.f32 0.0, %v331
    %333 = vmatprep.mubr.f32.mxu0 0.0
    %334 = vmatmul.mubr.f32.gmra.mxu0 %v54
    %v335 = vpop.f32.mrf.mxu0
    %v336 = vadd.f32 0.0, %v335
    %v337 = vpop.f32.mrf.mxu0
    %v338 = vadd.f32 0.0, %v337
    %339 = vdwg.mxu0
    %340 = vmatprep.subr.mxu0 0.0
    %341 = vmatpush1.msra.mxu0 0.0
    %342 = vmatprep.subr.mxu0 0.0
    %343 = vmatpush1.msra.mxu0 0.0
    %344 = vmatprep.subr.mxu0 0.0
    %345 = vmatpush1.msra.mxu0 0.0
    %346 = vmatprep.subr.mxu0 0.0
    %347 = vmatpush1.msra.mxu0 0.0
    %348 = vmatprep.subr.mxu0 0.0
    %349 = vmatpush1.msra.mxu0 0.0
    %350 = vmatprep.subr.mxu0 0.0
    %351 = vmatpush1.msra.mxu0 0.0
    %352 = vmatprep.subr.mxu0 0.0
    %353 = vmatpush1.msra.mxu0 0.0
    %354 = vmatprep.subr.mxu0 0.0
    %355 = vmatpush1.msra.mxu0 0.0
    %356 = vmatprep.subr.mxu0 0.0
    %357 = vmatpush1.msra.mxu0 0.0
    %358 = vmatprep.subr.mxu0 0.0
    %359 = vmatpush1.msra.mxu0 0.0
    %360 = vmatprep.subr.mxu0 0.0
    %361 = vmatpush1.msra.mxu0 0.0
    %362 = vmatprep.subr.mxu0 0.0
    %363 = vmatpush1.msra.mxu0 0.0
    %364 = vmatprep.subr.mxu0 0.0
    %365 = vmatpush1.msra.mxu0 0.0
    %366 = vmatprep.subr.mxu0 0.0
    %367 = vmatpush1.msra.mxu0 0.0
    %368 = vmatprep.subr.mxu0 0.0
    %369 = vmatpush1.msra.mxu0 0.0
    %370 = vmatprep.subr.mxu0 %v71
    %371 = vmatpush1.msra.mxu0 %v69
    %372 = vmatprep.subr.mxu0 0.0
    %373 = vmatpush2.msra.mxu0 0.0
    %374 = vmatprep.subr.mxu0 0.0
    %375 = vmatpush2.msra.mxu0 0.0
    %376 = vmatprep.subr.mxu0 0.0
    %377 = vmatpush2.msra.mxu0 0.0
    %378 = vmatprep.subr.mxu0 0.0
    %379 = vmatpush2.msra.mxu0 0.0
    %380 = vmatprep.subr.mxu0 0.0
    %381 = vmatpush2.msra.mxu0 0.0
    %382 = vmatprep.subr.mxu0 0.0
    %383 = vmatpush2.msra.mxu0 0.0
    %384 = vmatprep.subr.mxu0 0.0
    %385 = vmatpush2.msra.mxu0 0.0
    %386 = vmatprep.subr.mxu0 0.0
    %387 = vmatpush2.msra.mxu0 0.0
    %388 = vmatprep.subr.mxu0 0.0
    %389 = vmatpush2.msra.mxu0 0.0
    %390 = vmatprep.subr.mxu0 0.0
    %391 = vmatpush2.msra.mxu0 0.0
    %392 = vmatprep.subr.mxu0 0.0
    %393 = vmatpush2.msra.mxu0 0.0
    %394 = vmatprep.subr.mxu0 0.0
    %395 = vmatpush2.msra.mxu0 0.0
    %396 = vmatprep.subr.mxu0 0.0
    %397 = vmatpush2.msra.mxu0 0.0
    %398 = vmatprep.subr.mxu0 0.0
    %399 = vmatpush2.msra.mxu0 0.0
    %400 = vmatprep.subr.mxu0 0.0
    %401 = vmatpush2.msra.mxu0 0.0
    %402 = vmatprep.subr.mxu0 0.0
    %403 = vmatpush2.msra.mxu0 0.0
    %404 = vmatprep.mubr.f32.mxu0 0.0
    %405 = vmatmul.mubr.f32.gmra.mxu0 %v45
    %v406 = vpop.f32.mrf.mxu0
    %v407 = vadd.f32 0.0, %v406
    %v408 = vpop.f32.mrf.mxu0
    %v409 = vadd.f32 0.0, %v408
    %410 = vmatprep.mubr.f32.mxu0 0.0
    %411 = vmatmul.mubr.f32.gmra.mxu0 %v48
    %v412 = vpop.f32.mrf.mxu0
    %v413 = vadd.f32 0.0, %v412
    %v414 = vpop.f32.mrf.mxu0
    %v415 = vadd.f32 0.0, %v414
    %416 = vmatprep.mubr.f32.mxu0 0.0
    %417 = vmatmul.mubr.f32.gmra.mxu0 %v51
    %v418 = vpop.f32.mrf.mxu0
    %v419 = vadd.f32 0.0, %v418
    %v420 = vpop.f32.mrf.mxu0
    %v421 = vadd.f32 0.0, %v420
    %422 = vmatprep.mubr.f32.mxu0 0.0
    %423 = vmatmul.mubr.f32.gmra.mxu0 %v54
    %v424 = vpop.f32.mrf.mxu0
    %v425 = vadd.f32 0.0, %v424
    %v426 = vpop.f32.mrf.mxu0
    %v427 = vadd.f32 0.0, %v426
    %428 = vdwg.mxu0
    %429 = vst [vmem:[#allocation2] sm:$0xff] %v140
    %430 = vst [vmem:[#allocation2 + $0x8] sm:$0xff] %v142
    %431 = vst [vmem:[#allocation2 + $0x10] sm:$0xff] %v229
    %432 = vst [vmem:[#allocation2 + $0x18] sm:$0xff] %v231
    %433 = vst [vmem:[#allocation2 + $0x20] sm:$0xff] %v318
    %434 = vst [vmem:[#allocation2 + $0x28] sm:$0xff] %v320
    %435 = vst [vmem:[#allocation2 + $0x30] sm:$0xff] %v407
    %436 = vst [vmem:[#allocation2 + $0x38] sm:$0xff] %v409
    %437 = vst [vmem:[#allocation2 + $0x40] sm:$0xff] %v146
    %438 = vst [vmem:[#allocation2 + $0x48] sm:$0xff] %v148
    %439 = vst [vmem:[#allocation2 + $0x50] sm:$0xff] %v235
    %440 = vst [vmem:[#allocation2 + $0x58] sm:$0xff] %v237
    %441 = vst [vmem:[#allocation2 + $0x60] sm:$0xff] %v324
    %442 = vst [vmem:[#allocation2 + $0x68] sm:$0xff] %v326
    %443 = vst [vmem:[#allocation2 + $0x70] sm:$0xff] %v413
    %444 = vst [vmem:[#allocation2 + $0x78] sm:$0xff] %v415
    %445 = vst [vmem:[#allocation2 + $0x80] sm:$0xff] %v152
    %446 = vst [vmem:[#allocation2 + $0x88] sm:$0xff] %v154
    %447 = vst [vmem:[#allocation2 + $0x90] sm:$0xff] %v241
    %448 = vst [vmem:[#allocation2 + $0x98] sm:$0xff] %v243
    %449 = vst [vmem:[#allocation2 + $0xa0] sm:$0xff] %v330
    %450 = vst [vmem:[#allocation2 + $0xa8] sm:$0xff] %v332
    %451 = vst [vmem:[#allocation2 + $0xb0] sm:$0xff] %v419
    %452 = vst [vmem:[#allocation2 + $0xb8] sm:$0xff] %v421
    %453 = vst [vmem:[#allocation2 + $0xc0] sm:$0xff] %v158
    %454 = vst [vmem:[#allocation2 + $0xc8] sm:$0xff] %v160
    %455 = vst [vmem:[#allocation2 + $0xd0] sm:$0xff] %v247
    %456 = vst [vmem:[#allocation2 + $0xd8] sm:$0xff] %v249
    %457 = vst [vmem:[#allocation2 + $0xe0] sm:$0xff] %v336
    %458 = vst [vmem:[#allocation2 + $0xe8] sm:$0xff] %v338
    %459 = vst [vmem:[#allocation2 + $0xf0] sm:$0xff] %v425
    %460 = vst [vmem:[#allocation2 + $0xf8] sm:$0xff] %v427
    %v461 = vld [vmem:[#allocation2] sm:$0xff]
    %462 = vst [vmem:[#allocation3] sm:$0xff] %v461
    %v463 = vld [vmem:[#allocation2 + $0x40] sm:$0xff]
    %464 = vst [vmem:[#allocation3 + $0x8] sm:$0xff] %v463
    %v465 = vld [vmem:[#allocation2 + $0x80] sm:$0xff]
    %466 = vst [vmem:[#allocation3 + $0x10] sm:$0xff] %v465
    %v467 = vld [vmem:[#allocation2 + $0xc0] sm:$0xff]
    %468 = vst [vmem:[#allocation3 + $0x18] sm:$0xff] %v467
    %v469 = vld [vmem:[#allocation2 + $0x8] sm:$0xff]
    %470 = vst [vmem:[#allocation3 + $0x20] sm:$0xff] %v469
    %v471 = vld [vmem:[#allocation2 + $0x48] sm:$0xff]
    %472 = vst [vmem:[#allocation3 + $0x28] sm:$0xff] %v471
    %v473 = vld [vmem:[#allocation2 + $0x88] sm:$0xff]
    %474 = vst [vmem:[#allocation3 + $0x30] sm:$0xff] %v473
    %v475 = vld [vmem:[#allocation2 + $0xc8] sm:$0xff]
    %476 = vst [vmem:[#allocation3 + $0x38] sm:$0xff] %v475
    %v477 = vld [vmem:[#allocation2 + $0x10] sm:$0xff]
    %478 = vst [vmem:[#allocation3 + $0x40] sm:$0xff] %v477
    %v479 = vld [vmem:[#allocation2 + $0x50] sm:$0xff]
    %480 = vst [vmem:[#allocation3 + $0x48] sm:$0xff] %v479
    %v481 = vld [vmem:[#allocation2 + $0x90] sm:$0xff]
    %482 = vst [vmem:[#allocation3 + $0x50] sm:$0xff] %v481
    %v483 = vld [vmem:[#allocation2 + $0xd0] sm:$0xff]
    %484 = vst [vmem:[#allocation3 + $0x58] sm:$0xff] %v483
    %v485 = vld [vmem:[#allocation2 + $0x18] sm:$0xff]
    %486 = vst [vmem:[#allocation3 + $0x60] sm:$0xff] %v485
    %v487 = vld [vmem:[#allocation2 + $0x58] sm:$0xff]
    %488 = vst [vmem:[#allocation3 + $0x68] sm:$0xff] %v487
    %v489 = vld [vmem:[#allocation2 + $0x98] sm:$0xff]
    %490 = vst [vmem:[#allocation3 + $0x70] sm:$0xff] %v489
    %v491 = vld [vmem:[#allocation2 + $0xd8] sm:$0xff]
    %492 = vst [vmem:[#allocation3 + $0x78] sm:$0xff] %v491
    %v493 = vld [vmem:[#allocation2 + $0x20] sm:$0xff]
    %494 = vst [vmem:[#allocation3 + $0x80] sm:$0xff] %v493
    %v495 = vld [vmem:[#allocation2 + $0x60] sm:$0xff]
    %496 = vst [vmem:[#allocation3 + $0x88] sm:$0xff] %v495
    %v497 = vld [vmem:[#allocation2 + $0xa0] sm:$0xff]
    %498 = vst [vmem:[#allocation3 + $0x90] sm:$0xff] %v497
    %v499 = vld [vmem:[#allocation2 + $0xe0] sm:$0xff]
    %500 = vst [vmem:[#allocation3 + $0x98] sm:$0xff] %v499
    %v501 = vld [vmem:[#allocation2 + $0x28] sm:$0xff]
    %502 = vst [vmem:[#allocation3 + $0xa0] sm:$0xff] %v501
    %v503 = vld [vmem:[#allocation2 + $0x68] sm:$0xff]
    %504 = vst [vmem:[#allocation3 + $0xa8] sm:$0xff] %v503
    %v505 = vld [vmem:[#allocation2 + $0xa8] sm:$0xff]
    %506 = vst [vmem:[#allocation3 + $0xb0] sm:$0xff] %v505
    %v507 = vld [vmem:[#allocation2 + $0xe8] sm:$0xff]
    %508 = vst [vmem:[#allocation3 + $0xb8] sm:$0xff] %v507
    %v509 = vld [vmem:[#allocation2 + $0x30] sm:$0xff]
    %510 = vst [vmem:[#allocation3 + $0xc0] sm:$0xff] %v509
    %v511 = vld [vmem:[#allocation2 + $0x70] sm:$0xff]
    %512 = vst [vmem:[#allocation3 + $0xc8] sm:$0xff] %v511
    %v513 = vld [vmem:[#allocation2 + $0xb0] sm:$0xff]
    %514 = vst [vmem:[#allocation3 + $0xd0] sm:$0xff] %v513
    %v515 = vld [vmem:[#allocation2 + $0xf0] sm:$0xff]
    %516 = vst [vmem:[#allocation3 + $0xd8] sm:$0xff] %v515
    %v517 = vld [vmem:[#allocation2 + $0x38] sm:$0xff]
    %518 = vst [vmem:[#allocation3 + $0xe0] sm:$0xff] %v517
    %v519 = vld [vmem:[#allocation2 + $0x78] sm:$0xff]
    %520 = vst [vmem:[#allocation3 + $0xe8] sm:$0xff] %v519
    %v521 = vld [vmem:[#allocation2 + $0xb8] sm:$0xff]
    %522 = vst [vmem:[#allocation3 + $0xf0] sm:$0xff] %v521
    %v523 = vld [vmem:[#allocation2 + $0xf8] sm:$0xff]
    %524 = vst [vmem:[#allocation3 + $0xf8] sm:$0xff] %v523
    %v525 = vld [vmem:[#allocation4] sm:$0xff]
    %v526 = vld [vmem:[#allocation3] sm:$0xff]
    %v527 = vld [vmem:[#allocation3 + $0x8] sm:$0xff]
    %v528 = vld [vmem:[#allocation3 + $0x10] sm:$0xff]
    %v529 = vld [vmem:[#allocation3 + $0x18] sm:$0xff]
    %v530 = vld [vmem:[#allocation3 + $0x20] sm:$0xff]
    %v531 = vld [vmem:[#allocation3 + $0x28] sm:$0xff]
    %v532 = vld [vmem:[#allocation3 + $0x30] sm:$0xff]
    %v533 = vld [vmem:[#allocation3 + $0x38] sm:$0xff]
    %v534 = vld [vmem:[#allocation3 + $0x40] sm:$0xff]
    %v535 = vld [vmem:[#allocation3 + $0x48] sm:$0xff]
    %v536 = vld [vmem:[#allocation3 + $0x50] sm:$0xff]
    %v537 = vld [vmem:[#allocation3 + $0x58] sm:$0xff]
    %v538 = vld [vmem:[#allocation3 + $0x60] sm:$0xff]
    %v539 = vld [vmem:[#allocation3 + $0x68] sm:$0xff]
    %v540 = vld [vmem:[#allocation3 + $0x70] sm:$0xff]
    %v541 = vld [vmem:[#allocation3 + $0x78] sm:$0xff]
    %v542 = vld [vmem:[#allocation3 + $0x80] sm:$0xff]
    %v543 = vld [vmem:[#allocation3 + $0x88] sm:$0xff]
    %v544 = vld [vmem:[#allocation3 + $0x90] sm:$0xff]
    %v545 = vld [vmem:[#allocation3 + $0x98] sm:$0xff]
    %v546 = vld [vmem:[#allocation3 + $0xa0] sm:$0xff]
    %v547 = vld [vmem:[#allocation3 + $0xa8] sm:$0xff]
    %v548 = vld [vmem:[#allocation3 + $0xb0] sm:$0xff]
    %v549 = vld [vmem:[#allocation3 + $0xb8] sm:$0xff]
    %v550 = vld [vmem:[#allocation3 + $0xc0] sm:$0xff]
    %v551 = vld [vmem:[#allocation3 + $0xc8] sm:$0xff]
    %v552 = vld [vmem:[#allocation3 + $0xd0] sm:$0xff]
    %v553 = vld [vmem:[#allocation3 + $0xd8] sm:$0xff]
    %v554 = vld [vmem:[#allocation3 + $0xe0] sm:$0xff]
    %v555 = vld [vmem:[#allocation3 + $0xe8] sm:$0xff]
    %v556 = vld [vmem:[#allocation3 + $0xf0] sm:$0xff]
    %v557 = vld [vmem:[#allocation3 + $0xf8] sm:$0xff]
    %vm558 = vcmask 523264
    %v560 = vsel %vm558, %v525, 0
    %562 = vmatprep.subr.mxu0 0.0
    %563 = vmatpush1.msra.mxu0 0.0
    %564 = vmatprep.subr.mxu0 0.0
    %565 = vmatpush1.msra.mxu0 0.0
    %566 = vmatprep.subr.mxu0 0.0
    %567 = vmatpush1.msra.mxu0 0.0
    %568 = vmatprep.subr.mxu0 0.0
    %569 = vmatpush1.msra.mxu0 0.0
    %570 = vmatprep.subr.mxu0 0.0
    %571 = vmatpush1.msra.mxu0 0.0
    %572 = vmatprep.subr.mxu0 0.0
    %573 = vmatpush1.msra.mxu0 0.0
    %574 = vmatprep.subr.mxu0 0.0
    %575 = vmatpush1.msra.mxu0 0.0
    %576 = vmatprep.subr.mxu0 0.0
    %577 = vmatpush1.msra.mxu0 0.0
    %578 = vmatprep.subr.mxu0 %v555
    %579 = vmatpush1.msra.mxu0 %v554
    %580 = vmatprep.subr.mxu0 %v551
    %581 = vmatpush1.msra.mxu0 %v550
    %582 = vmatprep.subr.mxu0 %v547
    %583 = vmatpush1.msra.mxu0 %v546
    %584 = vmatprep.subr.mxu0 %v543
    %585 = vmatpush1.msra.mxu0 %v542
    %586 = vmatprep.subr.mxu0 %v539
    %587 = vmatpush1.msra.mxu0 %v538
    %588 = vmatprep.subr.mxu0 %v535
    %589 = vmatpush1.msra.mxu0 %v534
    %590 = vmatprep.subr.mxu0 %v531
    %591 = vmatpush1.msra.mxu0 %v530
    %592 = vmatprep.subr.mxu0 %v527
    %593 = vmatpush1.msra.mxu0 %v526
    %594 = vmatprep.subr.mxu0 0.0
    %595 = vmatpush2.msra.mxu0 0.0
    %596 = vmatprep.subr.mxu0 0.0
    %597 = vmatpush2.msra.mxu0 0.0
    %598 = vmatprep.subr.mxu0 0.0
    %599 = vmatpush2.msra.mxu0 0.0
    %600 = vmatprep.subr.mxu0 0.0
    %601 = vmatpush2.msra.mxu0 0.0
    %602 = vmatprep.subr.mxu0 0.0
    %603 = vmatpush2.msra.mxu0 0.0
    %604 = vmatprep.subr.mxu0 0.0
    %605 = vmatpush2.msra.mxu0 0.0
    %606 = vmatprep.subr.mxu0 0.0
    %607 = vmatpush2.msra.mxu0 0.0
    %608 = vmatprep.subr.mxu0 0.0
    %609 = vmatpush2.msra.mxu0 0.0
    %610 = vmatprep.subr.mxu0 0.0
    %611 = vmatpush2.msra.mxu0 0.0
    %612 = vmatprep.subr.mxu0 0.0
    %613 = vmatpush2.msra.mxu0 0.0
    %614 = vmatprep.subr.mxu0 0.0
    %615 = vmatpush2.msra.mxu0 0.0
    %616 = vmatprep.subr.mxu0 0.0
    %617 = vmatpush2.msra.mxu0 0.0
    %618 = vmatprep.subr.mxu0 0.0
    %619 = vmatpush2.msra.mxu0 0.0
    %620 = vmatprep.subr.mxu0 0.0
    %621 = vmatpush2.msra.mxu0 0.0
    %622 = vmatprep.subr.mxu0 0.0
    %623 = vmatpush2.msra.mxu0 0.0
    %624 = vmatprep.subr.mxu0 0.0
    %625 = vmatpush2.msra.mxu0 0.0
    %626 = vmatprep.mubr.f32.mxu0 0.0
    %627 = vmatmul.mubr.f32.gmra.mxu0 %v560
    %v628 = vpop.f32.mrf.mxu0
    %v629 = vadd.f32 0.0, %v628
    %v630 = vpop.f32.mrf.mxu0
    %v631 = vadd.f32 0.0, %v630
    %632 = vdwg.mxu0
    %633 = vmatprep.subr.mxu0 0.0
    %634 = vmatpush1.msra.mxu0 0.0
    %635 = vmatprep.subr.mxu0 0.0
    %636 = vmatpush1.msra.mxu0 0.0
    %637 = vmatprep.subr.mxu0 0.0
    %638 = vmatpush1.msra.mxu0 0.0
    %639 = vmatprep.subr.mxu0 0.0
    %640 = vmatpush1.msra.mxu0 0.0
    %641 = vmatprep.subr.mxu0 0.0
    %642 = vmatpush1.msra.mxu0 0.0
    %643 = vmatprep.subr.mxu0 0.0
    %644 = vmatpush1.msra.mxu0 0.0
    %645 = vmatprep.subr.mxu0 0.0
    %646 = vmatpush1.msra.mxu0 0.0
    %647 = vmatprep.subr.mxu0 0.0
    %648 = vmatpush1.msra.mxu0 0.0
    %649 = vmatprep.subr.mxu0 %v557
    %650 = vmatpush1.msra.mxu0 %v556
    %651 = vmatprep.subr.mxu0 %v553
    %652 = vmatpush1.msra.mxu0 %v552
    %653 = vmatprep.subr.mxu0 %v549
    %654 = vmatpush1.msra.mxu0 %v548
    %655 = vmatprep.subr.mxu0 %v545
    %656 = vmatpush1.msra.mxu0 %v544
    %657 = vmatprep.subr.mxu0 %v541
    %658 = vmatpush1.msra.mxu0 %v540
    %659 = vmatprep.subr.mxu0 %v537
    %660 = vmatpush1.msra.mxu0 %v536
    %661 = vmatprep.subr.mxu0 %v533
    %662 = vmatpush1.msra.mxu0 %v532
    %663 = vmatprep.subr.mxu0 %v529
    %664 = vmatpush1.msra.mxu0 %v528
    %665 = vmatprep.subr.mxu0 0.0
    %666 = vmatpush2.msra.mxu0 0.0
    %667 = vmatprep.subr.mxu0 0.0
    %668 = vmatpush2.msra.mxu0 0.0
    %669 = vmatprep.subr.mxu0 0.0
    %670 = vmatpush2.msra.mxu0 0.0
    %671 = vmatprep.subr.mxu0 0.0
    %672 = vmatpush2.msra.mxu0 0.0
    %673 = vmatprep.subr.mxu0 0.0
    %674 = vmatpush2.msra.mxu0 0.0
    %675 = vmatprep.subr.mxu0 0.0
    %676 = vmatpush2.msra.mxu0 0.0
    %677 = vmatprep.subr.mxu0 0.0
    %678 = vmatpush2.msra.mxu0 0.0
    %679 = vmatprep.subr.mxu0 0.0
    %680 = vmatpush2.msra.mxu0 0.0
    %681 = vmatprep.subr.mxu0 0.0
    %682 = vmatpush2.msra.mxu0 0.0
    %683 = vmatprep.subr.mxu0 0.0
    %684 = vmatpush2.msra.mxu0 0.0
    %685 = vmatprep.subr.mxu0 0.0
    %686 = vmatpush2.msra.mxu0 0.0
    %687 = vmatprep.subr.mxu0 0.0
    %688 = vmatpush2.msra.mxu0 0.0
    %689 = vmatprep.subr.mxu0 0.0
    %690 = vmatpush2.msra.mxu0 0.0
    %691 = vmatprep.subr.mxu0 0.0
    %692 = vmatpush2.msra.mxu0 0.0
    %693 = vmatprep.subr.mxu0 0.0
    %694 = vmatpush2.msra.mxu0 0.0
    %695 = vmatprep.subr.mxu0 0.0
    %696 = vmatpush2.msra.mxu0 0.0
    %697 = vmatprep.mubr.f32.mxu0 0.0
    %698 = vmatmul.mubr.f32.gmra.mxu0 %v560
    %v699 = vpop.f32.mrf.mxu0
    %v700 = vadd.f32 0.0, %v699
    %v701 = vpop.f32.mrf.mxu0
    %v702 = vadd.f32 0.0, %v701
    %703 = vdwg.mxu0
    %704 = vst [vmem:[#allocation7] sm:$0xff] %v629
    %705 = vst [vmem:[#allocation7 + $0x8] sm:$0xff] %v631
    %706 = vst [vmem:[#allocation7 + $0x10] sm:$0xff] %v700
    %707 = vst [vmem:[#allocation7 + $0x18] sm:$0xff] %v702
    // Predicated region
    $region18: #{tpu_custom_call.1} parent=1 // pred_check
      _
    $region19: #{tpu_custom_call.1} parent=1 // pred_check_branch
      %709 = sbr.rel (0) target = $region21
    $region20: #{tpu_custom_call.1} parent=1 // pred_region
      %s711 = ssub.s32 512, 512
      %712 = vsyncadd [#allocation6], %s711
      %s714 = sshll.u32 [#allocation7], 4
      %s715 = int_to_ptr.vmem [resolvable:$true] %s714
      %717 = dma.vmem_to_hbm [thread:$0]  %s715, 512, %s3, [#allocation6]
    $region21: #{tpu_custom_call.1} parent=1 // pred_fallthru
      _
    // Predicated region
    $region22: #{tpu_custom_call.1} parent=1 // pred_check
      _
    $region23: #{tpu_custom_call.1} parent=1 // pred_check_branch
      %719 = sbr.rel (0) target = $region25
    $region24: #{tpu_custom_call.1} parent=1 // pred_region
      %720 = dma.done [#allocation6], 512
    $region25: #{tpu_custom_call.1} parent=1 // pred_fallthru
      _
    %721 = vsyncpa [#allocation5], 1
    %722 = vsyncpa [#allocation6], 1

</llo_original>
